<compile_context>
chip_gen: v5e
topology: v5e:2x2
jax: 0.10.0
libtpu: 0.0.40
codegen_flags: <defaults>
</compile_context>

<pallas_src>
import functools
import math

import jax
import jax.numpy as jnp
from jax.experimental import pallas as pl
from jax.experimental.pallas import tpu as pltpu

LEAKY_SLOPE = 0.01   # nn.LeakyReLU() default negative_slope
BN_EPS = 1e-5        # nn.BatchNorm1d default eps
ROW_ALIGN = 16       # bf16 sublane packing: 16 rows per packed sublane group


def _round_up(n, m):
    return ((n + m - 1) // m) * m


def _topology_kernel(num_layers, layer_in_dims, row_offsets, vec_row0,
                     hidden_dim, out_dim, x_ref, p_ref, out_ref):
    """Fused forward pass.  Everything is resident in VMEM (tiny MLP).

    p_ref : single packed bf16 parameter slab, shape [R, max(H, out)]:
              hidden W_l  at rows [row_offsets[l],  +in_l)
              W_out       at rows [row_offsets[-1], +H)
              gamma_l     at row  vec_row0 + 2l
              beta_l      at row  vec_row0 + 2l + 1
              b_out       at row  vec_row0 + 2*num_layers
    """
    B = x_ref.shape[0]
    inv_b = 1.0 / float(B)

    h = x_ref[...].astype(jnp.float32)

    for l in range(num_layers):
        in_dim = layer_in_dims[l]
        r0 = row_offsets[l]
        w = p_ref[r0:r0 + in_dim, 0:hidden_dim]                       # (in_dim, H) bf16

        # Linear on the MXU: bf16 x bf16 inputs, f32 accumulation.
        # Hidden bias dropped: exactly cancelled by training-mode (batch-stat) BatchNorm.
        h = jnp.dot(h.astype(jnp.bfloat16), w,
                    preferred_element_type=jnp.float32)               # (B, H) f32

        # BatchNorm1d (training mode: batch stats, biased variance),
        # one-pass statistics fused into a single per-feature scale/shift. f32 throughout.
        s1 = jnp.sum(h, axis=0, keepdims=True)
        s2 = jnp.sum(h * h, axis=0, keepdims=True)
        mean = s1 * inv_b
        var = jnp.maximum(s2 * inv_b - mean * mean, 0.0)              # clamp: NaN guard
        gamma = p_ref[vec_row0 + 2 * l:vec_row0 + 2 * l + 1, 0:hidden_dim].astype(jnp.float32)
        beta = p_ref[vec_row0 + 2 * l + 1:vec_row0 + 2 * l + 2, 0:hidden_dim].astype(jnp.float32)
        scale = gamma * jax.lax.rsqrt(var + BN_EPS)                   # EUP
        shift = beta - mean * scale
        h = h * scale + shift

        # LeakyReLU
        h = jnp.maximum(h, LEAKY_SLOPE * h)

    r_out = row_offsets[num_layers]
    w_out = p_ref[r_out:r_out + hidden_dim, 0:out_dim]                # (H, out) bf16
    b_out = p_ref[vec_row0 + 2 * num_layers:vec_row0 + 2 * num_layers + 1,
                  0:out_dim].astype(jnp.float32)                      # (1, out)
    logits = jnp.dot(h.astype(jnp.bfloat16), w_out,
                     preferred_element_type=jnp.float32) + b_out      # (B, out) f32

    # rho = 0.001 + softmax(logits, dim=1)
    m = jnp.max(logits, axis=1, keepdims=True)
    e = jnp.exp(logits - m)
    s = jnp.sum(e, axis=1, keepdims=True)
    out_ref[...] = 0.001 + e * pl.reciprocal(s, approx=True)          # EUP reciprocal


def pack_params(params, input_dim, hidden_dim, output_dim):
    """Pack every parameter into ONE bf16 slab (weights + vector rows) -> a single DMA."""
    num_layers = len(params["hidden"])
    cols = max(hidden_dim, output_dim)

    blocks = []
    row_offsets = []
    layer_in_dims = []
    cur = 0
    in_dim = input_dim
    for (w, _gamma, _beta) in params["hidden"]:
        rows = _round_up(in_dim, ROW_ALIGN)                  # keep offsets bf16-tile aligned
        blk = jnp.zeros((rows, cols), jnp.float32).at[:in_dim, :hidden_dim].set(w)
        blocks.append(blk)
        row_offsets.append(cur)
        layer_in_dims.append(in_dim)
        cur += rows
        in_dim = hidden_dim

    rows = _round_up(hidden_dim, ROW_ALIGN)
    blk = jnp.zeros((rows, cols), jnp.float32).at[:hidden_dim, :output_dim].set(params["w_out"])
    blocks.append(blk)
    row_offsets.append(cur)
    cur += rows

    # Vector rows (gamma/beta per layer, then b_out), padded to the alignment.
    vec_row0 = cur
    n_vec = 2 * num_layers + 1
    vec = jnp.zeros((_round_up(n_vec, ROW_ALIGN), cols), jnp.float32)
    for l, (_w, gamma, beta) in enumerate(params["hidden"]):
        vec = vec.at[2 * l, :hidden_dim].set(gamma)
        vec = vec.at[2 * l + 1, :hidden_dim].set(beta)
    vec = vec.at[2 * num_layers, :output_dim].set(params["b_out"])
    blocks.append(vec)

    p_slab = jnp.concatenate(blocks, axis=0).astype(jnp.bfloat16)
    return p_slab, tuple(row_offsets), vec_row0, tuple(layer_in_dims)


def topology_network_forward(x, p_slab, row_offsets, vec_row0, layer_in_dims,
                             hidden_dim, output_dim):
    num_layers = len(layer_in_dims)
    B = x.shape[0]

    kernel = functools.partial(_topology_kernel, num_layers, layer_in_dims,
                               row_offsets, vec_row0, hidden_dim, output_dim)

    vmem = lambda: pl.BlockSpec(memory_space=pltpu.MemorySpace.VMEM)
    return pl.pallas_call(
        kernel,
        out_shape=jax.ShapeDtypeStruct((B, output_dim), jnp.float32),
        in_specs=[vmem(), vmem()],
        out_specs=vmem(),
    )(x, p_slab)


def init_params(key, input_dim, num_layers, hidden_dim, output_dim):
    """Deterministic init mirroring the PyTorch module's __init__ (synthetic weights).

    Hidden-layer Linear biases are intentionally NOT created: they are zero-initialised
    in the reference and are mathematically cancelled by training-mode BatchNorm.
    """
    params = {"hidden": []}
    cur = input_dim
    for _ in range(num_layers):
        key, kw = jax.random.split(key)
        # xavier_normal_: std = sqrt(2 / (fan_in + fan_out)); stored as [in, out]
        std = math.sqrt(2.0 / (cur + hidden_dim))
        w = std * jax.random.normal(kw, (cur, hidden_dim), dtype=jnp.float32)
        gamma = jnp.ones((hidden_dim,), jnp.float32)      # BatchNorm1d weight
        beta = jnp.zeros((hidden_dim,), jnp.float32)      # BatchNorm1d bias
        params["hidden"].append((w, gamma, beta))
        cur = hidden_dim
    # Final Linear: PyTorch default init (uniform +/- 1/sqrt(fan_in))
    key, kw, kb = jax.random.split(key, 3)
    bound = 1.0 / math.sqrt(cur)
    params["w_out"] = jax.random.uniform(
        kw, (cur, output_dim), dtype=jnp.float32, minval=-bound, maxval=bound)
    params["b_out"] = jax.random.uniform(
        kb, (output_dim,), dtype=jnp.float32, minval=-bound, maxval=bound)
    return params


def reference_forward(x, params):
    """Pure-JAX reference: same bf16 matmul-input quantization as the kernel, but
    two-pass BN stats and exact softmax divide, all other math in f32."""
    h = x.astype(jnp.float32)
    for (w, gamma, beta) in params["hidden"]:
        h = jnp.dot(h.astype(jnp.bfloat16), w.astype(jnp.bfloat16),
                    preferred_element_type=jnp.float32)
        mean = jnp.mean(h, axis=0, keepdims=True)
        var = jnp.mean((h - mean) ** 2, axis=0, keepdims=True)
        h = (h - mean) / jnp.sqrt(var + BN_EPS) * gamma + beta
        h = jnp.where(h >= 0, h, LEAKY_SLOPE * h)
    logits = jnp.dot(h.astype(jnp.bfloat16), params["w_out"].astype(jnp.bfloat16),
                     preferred_element_type=jnp.float32) + params["b_out"]
    return 0.001 + jax.nn.softmax(logits, axis=1)


if __name__ == "__main__":
    # nnSettings: inputDim=16, numLayers=2, numNeuronsPerLyr=32, outputDim=4
    INPUT_DIM = 16
    NUM_LAYERS = 2
    HIDDEN = 32
    OUTPUT_DIM = 4
    BATCH = 8   # BN1d (training mode) uses whole-batch stats -> whole batch in one call.
                # For real throughput, raise BATCH or stack instances behind a parallel grid.

    key = jax.random.PRNGKey(0)
    key, kx = jax.random.split(key)
    x = jax.random.normal(kx, (BATCH, INPUT_DIM), dtype=jnp.float32)

    params = init_params(key, INPUT_DIM, NUM_LAYERS, HIDDEN, OUTPUT_DIM)
    p_slab, row_offsets, vec_row0, layer_in_dims = pack_params(
        params, INPUT_DIM, HIDDEN, OUTPUT_DIM)

    rho = topology_network_forward(x, p_slab, row_offsets, vec_row0,
                                   layer_in_dims, HIDDEN, OUTPUT_DIM)
    rho = jax.block_until_ready(rho)

    # Sanity checks.
    assert rho.shape == (BATCH, OUTPUT_DIM)
    assert bool(jnp.all(jnp.isfinite(rho)))
    row_sums = jnp.sum(rho - 0.001, axis=1)
    assert jnp.allclose(row_sums, jnp.ones_like(row_sums), atol=5e-3)

    ref = reference_forward(x, params)
    assert jnp.allclose(rho, ref, atol=5e-3, rtol=5e-3), \
        f"max abs err {jnp.max(jnp.abs(rho - ref))}"

    print("KERNEL_OK")
</pallas_src>

<mosaic_0001>
module attributes {stable_mosaic.version = 11 : i64} {
  func.func @_topology_kernel(%arg0: memref<8x16xf32, #tpu.memory_space<vmem>>, %arg1: memref<96x32xbf16, #tpu.memory_space<vmem>>, %arg2: memref<8x4xf32, #tpu.memory_space<vmem>>) attributes {dimension_semantics = [], scalar_prefetch = 0 : i64, scratch_operands = 0 : i64, tpu.core_type = #tpu.core_type<tc>} {
    %c0 = arith.constant 0 : index
    %c0_0 = arith.constant 0 : index
    %0 = vector.load %arg0[%c0, %c0_0] : memref<8x16xf32, #tpu.memory_space<vmem>>, vector<8x16xf32>
    %c0_1 = arith.constant 0 : index
    %c0_2 = arith.constant 0 : index
    %1 = vector.load %arg1[%c0_1, %c0_2] : memref<96x32xbf16, #tpu.memory_space<vmem>>, vector<16x32xbf16>
    %2 = arith.truncf %0 : vector<8x16xf32> to vector<8x16xbf16>
    %cst = arith.constant dense<0.000000e+00> : vector<8x32xf32>
    %3 = tpu.matmul %2, %1, %cst {dimension_numbers = #tpu.dot_dimension_numbers<[1], [0], [0], [1], [0, 0, 1, 1], [], []>} : vector<8x16xbf16>, vector<16x32xbf16>, vector<8x32xf32> -> vector<8x32xf32>
    %cst_3 = arith.constant dense<0.000000e+00> : vector<32xf32>
    %4 = vector.multi_reduction <add>, %3, %cst_3 [0] : vector<8x32xf32> to vector<32xf32>
    %5 = vector.shape_cast %4 : vector<32xf32> to vector<1x32xf32>
    %6 = arith.mulf %3, %3 : vector<8x32xf32>
    %cst_4 = arith.constant dense<0.000000e+00> : vector<32xf32>
    %7 = vector.multi_reduction <add>, %6, %cst_4 [0] : vector<8x32xf32> to vector<32xf32>
    %8 = vector.shape_cast %7 : vector<32xf32> to vector<1x32xf32>
    %cst_5 = arith.constant 1.250000e-01 : f32
    %9 = vector.broadcast %cst_5 : f32 to vector<1x32xf32>
    %10 = arith.mulf %5, %9 : vector<1x32xf32>
    %cst_6 = arith.constant 1.250000e-01 : f32
    %11 = vector.broadcast %cst_6 : f32 to vector<1x32xf32>
    %12 = arith.mulf %8, %11 : vector<1x32xf32>
    %13 = arith.mulf %10, %10 : vector<1x32xf32>
    %14 = arith.subf %12, %13 : vector<1x32xf32>
    %cst_7 = arith.constant 0.000000e+00 : f32
    %15 = vector.broadcast %cst_7 : f32 to vector<1x32xf32>
    %16 = arith.maximumf %14, %15 : vector<1x32xf32>
    %c80 = arith.constant 80 : index
    %c0_8 = arith.constant 0 : index
    %17 = vector.load %arg1[%c80, %c0_8] : memref<96x32xbf16, #tpu.memory_space<vmem>>, vector<1x32xbf16>
    %18 = arith.extf %17 : vector<1x32xbf16> to vector<1x32xf32>
    %c81 = arith.constant 81 : index
    %c0_9 = arith.constant 0 : index
    %19 = vector.load %arg1[%c81, %c0_9] : memref<96x32xbf16, #tpu.memory_space<vmem>>, vector<1x32xbf16>
    %20 = arith.extf %19 : vector<1x32xbf16> to vector<1x32xf32>
    %cst_10 = arith.constant 9.99999974E-6 : f32
    %21 = vector.broadcast %cst_10 : f32 to vector<1x32xf32>
    %22 = arith.addf %16, %21 : vector<1x32xf32>
    %23 = math.rsqrt %22 : vector<1x32xf32>
    %24 = arith.mulf %18, %23 : vector<1x32xf32>
    %25 = arith.mulf %10, %24 : vector<1x32xf32>
    %26 = arith.subf %20, %25 : vector<1x32xf32>
    %27 = vector.broadcast %24 : vector<1x32xf32> to vector<8x32xf32>
    %28 = arith.mulf %3, %27 : vector<8x32xf32>
    %29 = vector.broadcast %26 : vector<1x32xf32> to vector<8x32xf32>
    %30 = arith.addf %28, %29 : vector<8x32xf32>
    %cst_11 = arith.constant 0.00999999977 : f32
    %31 = vector.broadcast %cst_11 : f32 to vector<8x32xf32>
    %32 = arith.mulf %31, %30 : vector<8x32xf32>
    %33 = arith.maximumf %30, %32 : vector<8x32xf32>
    %c16 = arith.constant 16 : index
    %c0_12 = arith.constant 0 : index
    %34 = vector.load %arg1[%c16, %c0_12] : memref<96x32xbf16, #tpu.memory_space<vmem>>, vector<32x32xbf16>
    %35 = arith.truncf %33 : vector<8x32xf32> to vector<8x32xbf16>
    %cst_13 = arith.constant dense<0.000000e+00> : vector<8x32xf32>
    %36 = tpu.matmul %35, %34, %cst_13 {dimension_numbers = #tpu.dot_dimension_numbers<[1], [0], [0], [1], [0, 0, 1, 1], [], []>} : vector<8x32xbf16>, vector<32x32xbf16>, vector<8x32xf32> -> vector<8x32xf32>
    %cst_14 = arith.constant dense<0.000000e+00> : vector<32xf32>
    %37 = vector.multi_reduction <add>, %36, %cst_14 [0] : vector<8x32xf32> to vector<32xf32>
    %38 = vector.shape_cast %37 : vector<32xf32> to vector<1x32xf32>
    %39 = arith.mulf %36, %36 : vector<8x32xf32>
    %cst_15 = arith.constant dense<0.000000e+00> : vector<32xf32>
    %40 = vector.multi_reduction <add>, %39, %cst_15 [0] : vector<8x32xf32> to vector<32xf32>
    %41 = vector.shape_cast %40 : vector<32xf32> to vector<1x32xf32>
    %cst_16 = arith.constant 1.250000e-01 : f32
    %42 = vector.broadcast %cst_16 : f32 to vector<1x32xf32>
    %43 = arith.mulf %38, %42 : vector<1x32xf32>
    %cst_17 = arith.constant 1.250000e-01 : f32
    %44 = vector.broadcast %cst_17 : f32 to vector<1x32xf32>
    %45 = arith.mulf %41, %44 : vector<1x32xf32>
    %46 = arith.mulf %43, %43 : vector<1x32xf32>
    %47 = arith.subf %45, %46 : vector<1x32xf32>
    %cst_18 = arith.constant 0.000000e+00 : f32
    %48 = vector.broadcast %cst_18 : f32 to vector<1x32xf32>
    %49 = arith.maximumf %47, %48 : vector<1x32xf32>
    %c82 = arith.constant 82 : index
    %c0_19 = arith.constant 0 : index
    %50 = vector.load %arg1[%c82, %c0_19] : memref<96x32xbf16, #tpu.memory_space<vmem>>, vector<1x32xbf16>
    %51 = arith.extf %50 : vector<1x32xbf16> to vector<1x32xf32>
    %c83 = arith.constant 83 : index
    %c0_20 = arith.constant 0 : index
    %52 = vector.load %arg1[%c83, %c0_20] : memref<96x32xbf16, #tpu.memory_space<vmem>>, vector<1x32xbf16>
    %53 = arith.extf %52 : vector<1x32xbf16> to vector<1x32xf32>
    %cst_21 = arith.constant 9.99999974E-6 : f32
    %54 = vector.broadcast %cst_21 : f32 to vector<1x32xf32>
    %55 = arith.addf %49, %54 : vector<1x32xf32>
    %56 = math.rsqrt %55 : vector<1x32xf32>
    %57 = arith.mulf %51, %56 : vector<1x32xf32>
    %58 = arith.mulf %43, %57 : vector<1x32xf32>
    %59 = arith.subf %53, %58 : vector<1x32xf32>
    %60 = vector.broadcast %57 : vector<1x32xf32> to vector<8x32xf32>
    %61 = arith.mulf %36, %60 : vector<8x32xf32>
    %62 = vector.broadcast %59 : vector<1x32xf32> to vector<8x32xf32>
    %63 = arith.addf %61, %62 : vector<8x32xf32>
    %cst_22 = arith.constant 0.00999999977 : f32
    %64 = vector.broadcast %cst_22 : f32 to vector<8x32xf32>
    %65 = arith.mulf %64, %63 : vector<8x32xf32>
    %66 = arith.maximumf %63, %65 : vector<8x32xf32>
    %c48 = arith.constant 48 : index
    %c0_23 = arith.constant 0 : index
    %67 = vector.load %arg1[%c48, %c0_23] : memref<96x32xbf16, #tpu.memory_space<vmem>>, vector<32x4xbf16>
    %c84 = arith.constant 84 : index
    %c0_24 = arith.constant 0 : index
    %68 = vector.load %arg1[%c84, %c0_24] : memref<96x32xbf16, #tpu.memory_space<vmem>>, vector<1x4xbf16>
    %69 = arith.extf %68 : vector<1x4xbf16> to vector<1x4xf32>
    %70 = arith.truncf %66 : vector<8x32xf32> to vector<8x32xbf16>
    %cst_25 = arith.constant dense<0.000000e+00> : vector<8x4xf32>
    %71 = tpu.matmul %70, %67, %cst_25 {dimension_numbers = #tpu.dot_dimension_numbers<[1], [0], [0], [1], [0, 0, 1, 1], [], []>} : vector<8x32xbf16>, vector<32x4xbf16>, vector<8x4xf32> -> vector<8x4xf32>
    %72 = vector.broadcast %69 : vector<1x4xf32> to vector<8x4xf32>
    %73 = arith.addf %71, %72 : vector<8x4xf32>
    %cst_26 = arith.constant dense<0xFF800000> : vector<8xf32>
    %74 = vector.multi_reduction <maximumf>, %73, %cst_26 [1] : vector<8x4xf32> to vector<8xf32>
    %75 = vector.shape_cast %74 : vector<8xf32> to vector<8x1xf32>
    %76 = vector.broadcast %75 : vector<8x1xf32> to vector<8x4xf32>
    %77 = arith.subf %73, %76 : vector<8x4xf32>
    %78 = math.exp %77 : vector<8x4xf32>
    %cst_27 = arith.constant dense<0.000000e+00> : vector<8xf32>
    %79 = vector.multi_reduction <add>, %78, %cst_27 [1] : vector<8x4xf32> to vector<8xf32>
    %80 = vector.shape_cast %79 : vector<8xf32> to vector<8x1xf32>
    %81 = tpu.reciprocal %80 {approx = true} : vector<8x1xf32> -> vector<8x1xf32>
    %82 = vector.broadcast %81 : vector<8x1xf32> to vector<8x4xf32>
    %83 = arith.mulf %78, %82 : vector<8x4xf32>
    %cst_28 = arith.constant 1.000000e-03 : f32
    %84 = vector.broadcast %cst_28 : f32 to vector<8x4xf32>
    %85 = arith.addf %84, %83 : vector<8x4xf32>
    %c0_29 = arith.constant 0 : index
    %c0_30 = arith.constant 0 : index
    %86 = vector.load %arg2[%c0_29, %c0_30] : memref<8x4xf32, #tpu.memory_space<vmem>>, vector<8x4xf32>
    tpu.vector_store %arg2[%c0_29, %c0_30], %85 {strides = array<i32>} : memref<8x4xf32, #tpu.memory_space<vmem>>, vector<8x4xf32>,
    return
  }
}

</mosaic_0001>

<llo_original>
// kernel: tpu_custom_call.1
$region0: #{tpu_custom_call.1}
  #allocation0 [shape = 'u32[]', space=smem, size = 0x4, offset = 0x4, fixed_abs, tag = 'smem constant byte address 0x4 - core index']
  #allocation1 [shape = 'u32[72,128]{1,0:T(1,128)}', space=vmem, size = 0x9000, scoped, tag = 'internal scratch']
  %s0 = inlined_call_operand.vmem [shape: f32[8,16], index: 0, kind: input, shape index: {}]
  %s1 = inlined_call_operand.vmem [shape: bf16[96,32], index: 1, kind: input, shape index: {}]
  %s2 = inlined_call_operand.vmem [shape: f32[8,4], index: 2, kind: output, shape index: {}]
  %s3 = sld [smem:[#allocation0]]
  $region18: #{tpu_custom_call.1} parent=0
    _
  %s5 = ssub.s32 1, %s3
  %s6 = scalar_select 0, %s5, %s3
  // Predicated region
  $region2: #{tpu_custom_call.1} parent=0 // pred_check
    _
  $region3: #{tpu_custom_call.1} parent=0 // pred_check_branch
    %8 = sbr.rel (0) target = $region5
  $region4: #{tpu_custom_call.1} parent=0 // pred_region
    _
  $region5: #{tpu_custom_call.1} parent=0 // pred_fallthru
    _
  // Predicated region
  $region6: #{tpu_custom_call.1} parent=0 // pred_check
    _
  $region7: #{tpu_custom_call.1} parent=0 // pred_check_branch
    %10 = sbr.rel (0) target = $region9
  $region8: #{tpu_custom_call.1} parent=0 // pred_region
    _
  $region9: #{tpu_custom_call.1} parent=0 // pred_fallthru
    _
  %v12 = vld [vmem:[%s0] sm:$0xff]
  %v13 = vld [vmem:[%s1] sm:$0xf]
  %v14 = vld [vmem:[%s1 + $0x4] sm:$0xf]
  %v15 = vpack.c.bf16 %v12, %v12
  %v18 = vunpack.c.l.b16 %v13
  %v19 = vunpack.c.l.b16 %v14
  %v20 = vpack.c.b16 %v19, %v18
  %vm22 = vcmask 130048
  %v24 = vsel %vm22, %v15, 0
  %26 = vmatpush.bf16.msra.mxu0 0
  %27 = vmatpush.bf16.msra.mxu0 0
  %28 = vmatpush.bf16.msra.mxu0 0
  %29 = vmatpush.bf16.msra.mxu0 0
  %30 = vmatpush.bf16.msra.mxu0 0
  %31 = vmatpush.bf16.msra.mxu0 0
  %32 = vmatpush.bf16.msra.mxu0 0
  %33 = vmatpush.bf16.msra.mxu0 %v20
  %34 = vmatmul.bf16.gmra.mxu0 %v24
  %v35 = vpop.f32.mrf.mxu0
  %v36 = vadd.f32 0.0, %v35
  %v37 = vpop.f32.mrf.mxu0
  %38 = vdwg.mxu0
  %vm39 = vcmask 261120
  %v40 = vsel %vm39, %v36, 0.0
  %v41 = vrot.slane %v40, 4
  %v42 = vadd.f32 %v40, %v41
  %v43 = vrot.slane %v42, 2
  %v44 = vadd.f32 %v42, %v43
  %v45 = vrot.slane %v44, 1
  %v46 = vadd.f32 %v44, %v45
  %v47 = vmul.f32 %v36, %v36
  %v48 = vsel %vm39, %v47, 0.0
  %v49 = vrot.slane %v48, 4
  %v50 = vadd.f32 %v48, %v49
  %v51 = vrot.slane %v50, 2
  %v52 = vadd.f32 %v50, %v51
  %v53 = vrot.slane %v52, 1
  %v54 = vadd.f32 %v52, %v53
  %v55 = vmul.f32 %v46, 0.125
  %v56 = vmul.f32 %v54, 0.125
  %v57 = vmul.f32 %v55, %v55
  %v58 = vsub.f32 %v56, %v57
  %v59 = vmax.f32 %v58, 0.0
  %v60 = vld [vmem:[%s1 + $0x28] sm:$0x1]
  %v61 = vunpack.c.l.bf16 %v60
  %v62 = vadd.f32 %v59, 1e-05
  %v63 = vrsqrt.pop %v62
  %v64 = vmul.f32 %v63, %v62
  %v65 = vmul.f32 %v64, %v63
  %v66 = vmul.f32 0.5, %v65
  %v67 = vsub.f32 1.5, %v66
  %v68 = vmul.f32 %v63, %v67
  %vm69 = vweird.f32 %v62
  %vm70 = vweird.f32 %v63
  %vm71 = vmor %vm69, %vm70
  %v72 = vsel %vm71, %v63, %v68
  %v73 = vmul.f32 %v61, %v72
  %v74 = vmul.f32 %v55, %v73
  %v76 = vrot.slane %v74, 7
  %v78 = vsub.f32 %v61, %v76
  %v79 = vperm.slane %v73, 0
  %v80 = vmul.f32 %v36, %v79
  %v81 = vperm.slane %v78, 1
  %v82 = vadd.f32 %v80, %v81
  %v83 = vmul.f32 %v82, 0.01
  %v84 = vmax.f32 %v82, %v83
  %v85 = vld [vmem:[%s1 + $0x8] sm:$0xf]
  %v86 = vld [vmem:[%s1 + $0xc] sm:$0xf]
  %v87 = vld [vmem:[%s1 + $0x10] sm:$0xf]
  %v88 = vld [vmem:[%s1 + $0x14] sm:$0xf]
  %v89 = vpack.c.bf16 %v84, %v84
  %v94 = vunpack.c.l.b16 %v85
  %v95 = vunpack.c.l.b16 %v86
  %v96 = vunpack.c.l.b16 %v87
  %v97 = vunpack.c.l.b16 %v88
  %v98 = vpack.c.b16 %v95, %v94
  %v99 = vpack.c.b16 %v97, %v96
  %v103 = vsel %vm39, %v89, 0
  %105 = vmatpush.bf16.msra.mxu0 0
  %106 = vmatpush.bf16.msra.mxu0 0
  %107 = vmatpush.bf16.msra.mxu0 0
  %108 = vmatpush.bf16.msra.mxu0 0
  %109 = vmatpush.bf16.msra.mxu0 0
  %110 = vmatpush.bf16.msra.mxu0 0
  %111 = vmatpush.bf16.msra.mxu0 %v99
  %112 = vmatpush.bf16.msra.mxu0 %v98
  %113 = vmatmul.bf16.gmra.mxu0 %v103
  %v114 = vpop.f32.mrf.mxu0
  %v115 = vadd.f32 0.0, %v114
  %v116 = vpop.f32.mrf.mxu0
  %117 = vdwg.mxu0
  %v118 = vsel %vm39, %v115, 0.0
  %v119 = vrot.slane %v118, 4
  %v120 = vadd.f32 %v118, %v119
  %v121 = vrot.slane %v120, 2
  %v122 = vadd.f32 %v120, %v121
  %v123 = vrot.slane %v122, 1
  %v124 = vadd.f32 %v122, %v123
  %v125 = vmul.f32 %v115, %v115
  %v126 = vsel %vm39, %v125, 0.0
  %v127 = vrot.slane %v126, 4
  %v128 = vadd.f32 %v126, %v127
  %v129 = vrot.slane %v128, 2
  %v130 = vadd.f32 %v128, %v129
  %v131 = vrot.slane %v130, 1
  %v132 = vadd.f32 %v130, %v131
  %v133 = vmul.f32 %v124, 0.125
  %v134 = vmul.f32 %v132, 0.125
  %v135 = vmul.f32 %v133, %v133
  %v136 = vsub.f32 %v134, %v135
  %v137 = vmax.f32 %v136, 0.0
  %v138 = vld [vmem:[%s1 + $0x28] sm:$0x2]
  %v139 = vunpack.c.l.bf16 %v138
  %v140 = vadd.f32 %v137, 1e-05
  %v141 = vrsqrt.pop %v140
  %v142 = vmul.f32 %v141, %v140
  %v143 = vmul.f32 %v142, %v141
  %v144 = vmul.f32 0.5, %v143
  %v145 = vsub.f32 1.5, %v144
  %v146 = vmul.f32 %v141, %v145
  %vm147 = vweird.f32 %v140
  %vm148 = vweird.f32 %v141
  %vm149 = vmor %vm147, %vm148
  %v150 = vsel %vm149, %v141, %v146
  %v151 = vmul.f32 %v139, %v150
  %v152 = vmul.f32 %v133, %v151
  %v154 = vrot.slane %v152, 7
  %v156 = vsub.f32 %v139, %v154
  %v157 = vperm.slane %v151, 2
  %v158 = vmul.f32 %v115, %v157
  %v159 = vperm.slane %v156, 3
  %v160 = vadd.f32 %v158, %v159
  %v161 = vmul.f32 %v160, 0.01
  %v162 = vmax.f32 %v160, %v161
  %v163 = vld [vmem:[%s1 + $0x18] sm:$0xf]
  %v164 = vld [vmem:[%s1 + $0x1c] sm:$0xf]
  %v165 = vld [vmem:[%s1 + $0x20] sm:$0xf]
  %v166 = vld [vmem:[%s1 + $0x24] sm:$0xf]
  %v167 = vld [vmem:[%s1 + $0x28] sm:$0x4]
  %v168 = vunpack.c.l.bf16 %v167
  %v169 = vpack.c.bf16 %v162, %v162
  %v170 = vperm.slane %v168, 4
  %v175 = vunpack.c.l.b16 %v163
  %v176 = vunpack.c.l.b16 %v164
  %v177 = vunpack.c.l.b16 %v165
  %v178 = vunpack.c.l.b16 %v166
  %v179 = vpack.c.b16 %v176, %v175
  %v180 = vpack.c.b16 %v178, %v177
  %v184 = vsel %vm39, %v169, 0
  %186 = vmatpush.bf16.msra.mxu0 0
  %187 = vmatpush.bf16.msra.mxu0 0
  %188 = vmatpush.bf16.msra.mxu0 0
  %189 = vmatpush.bf16.msra.mxu0 0
  %190 = vmatpush.bf16.msra.mxu0 0
  %191 = vmatpush.bf16.msra.mxu0 0
  %192 = vmatpush.bf16.msra.mxu0 %v180
  %193 = vmatpush.bf16.msra.mxu0 %v179
  %194 = vmatmul.bf16.gmra.mxu0 %v184
  %v195 = vpop.f32.mrf.mxu0
  %v196 = vadd.f32 %v170, %v195
  %v197 = vpop.f32.mrf.mxu0
  %198 = vdwg.mxu0
  %vm199 = vcmask 31744
  %v200 = vsel %vm199, %v196, -inf
  %201 = vmax.xlane.f32.xlu0 %v200
  %v202 = vpop.xlane.xlu0 %201
  %v203 = vsub.f32 %v196, %v202
  %v204 = vmul.f32 %v203, 1.442695
  %v205 = vpow.pop %v204
  %v206 = vsel %vm199, %v205, 0.0
  %207 = vadd.xlane.f32.xlu0 %v206
  %v208 = vpop.xlane.xlu0 %207
  %v209 = vrcp.pop %v208
  %v210 = vmul.f32 %v205, %v209
  %v211 = vadd.f32 %v210, 0.001
  %212 = vst.msk [vmem:[%s2] sm:$0xff] %vm199, %v211
  // Predicated region
  $region10: #{tpu_custom_call.1} parent=0 // pred_check
    _
  $region11: #{tpu_custom_call.1} parent=0 // pred_check_branch
    %214 = sbr.rel (0) target = $region13
  $region12: #{tpu_custom_call.1} parent=0 // pred_region
    _
  $region13: #{tpu_custom_call.1} parent=0 // pred_fallthru
    _
  // Predicated region
  $region14: #{tpu_custom_call.1} parent=0 // pred_check
    _
  $region15: #{tpu_custom_call.1} parent=0 // pred_check_branch
    %216 = sbr.rel (0) target = $region17
  $region16: #{tpu_custom_call.1} parent=0 // pred_region
    _
  $region17: #{tpu_custom_call.1} parent=0 // pred_fallthru
    _

</llo_original>
